<compile_context>
chip_gen: v6e
topology: v6e:2x2x1
jax: 0.10.0
libtpu: 0.0.40
codegen_flags: <defaults>
</compile_context>

<pallas_src>
import functools

import jax
import jax.numpy as jnp
from jax import lax
from jax.experimental import pallas as pl
from jax.experimental.pallas import tpu as pltpu


def _round_up(x: int, m: int) -> int:
    return (x + m - 1) // m * m


def _vmem_budgets():
    """(vmem_limit_bytes, tile_budget_bytes), generation aware."""
    vmem_bytes = None
    try:
        info = pltpu.get_tpu_info()
        for attr in ("vmem_capacity_bytes", "vmem_size_bytes", "vmem_bytes"):
            v = getattr(info, attr, None)
            if v:
                vmem_bytes = int(v)
                break
    except Exception:
        vmem_bytes = None
    if vmem_bytes is None:
        vmem_bytes = 64 * 1024 * 1024          # conservative (v7x-sized)
    if vmem_bytes >= 96 * 1024 * 1024:         # v5e / v6e: 128 MiB per core
        return 100 * 1024 * 1024, 72 * 1024 * 1024
    return 48 * 1024 * 1024, 30 * 1024 * 1024  # v7x: 64 MiB per core


# --------------------------------------------------------------------------
# Pass 1: dense -> gelu -> LayerNorm   (one row tile per grid step)
# --------------------------------------------------------------------------
def _transform_kernel(h_ref, wd_ref, bd_ref, gamma_ref, beta_ref, t_ref, *,
                      eps, compute_dtype):
    # cast in-kernel (input rows arrive in their native dtype)
    x = h_ref[...].astype(compute_dtype)                              # (tm, H)
    # dense (MXU, f32 accumulation)
    y = jnp.dot(x, wd_ref[...], preferred_element_type=jnp.float32)   # (tm, H) f32
    y = y + bd_ref[...]
    # exact erf-based gelu (ACT2FN["gelu"])
    y = 0.5 * y * (1.0 + lax.erf(y * 0.7071067811865476))
    # LayerNorm over last dim, single-sweep f32 statistics
    mean = jnp.mean(y, axis=-1, keepdims=True)
    mean_sq = jnp.mean(y * y, axis=-1, keepdims=True)
    var = jnp.maximum(mean_sq - mean * mean, 0.0)
    y = (y - mean) * lax.rsqrt(var + eps)
    y = y * gamma_ref[...] + beta_ref[...]
    t_ref[...] = y.astype(t_ref.dtype)


# --------------------------------------------------------------------------
# Pass 2: decoder matmul + tied bias.
# Grid = (cdiv(V, tv), M_pad/tm), rows innermost, so the (H, tv) weight tile
# index is constant across the inner axis and streams from HBM exactly once.
# --------------------------------------------------------------------------
def _decoder_kernel(t_ref, wdec_ref, bdec_ref, o_ref):
    logits = jnp.dot(t_ref[...], wdec_ref[...],
                     preferred_element_type=jnp.float32)
    logits = logits + bdec_ref[...]
    o_ref[...] = logits.astype(o_ref.dtype)


def _decoder_tile_bytes(tm, tv, H, cbytes, obytes):
    # double-buffered pipelined tiles (t, wdec, bias, out) + f32 dot result
    return (2 * (tm * H * cbytes + H * tv * cbytes + tv * 4 + tm * tv * obytes)
            + tm * tv * 4)


def prepare_params(params, compute_dtype=jnp.bfloat16):
    """One-time weight preparation (cast / reshape) — hoisted out of the hot path."""
    H = params["dense_w"].shape[0]
    V = params["decoder_w"].shape[1]
    return {
        "dense_w": params["dense_w"].astype(compute_dtype),          # (H, H)
        "dense_b": params["dense_b"].reshape(1, H).astype(jnp.float32),
        "ln_gamma": params["ln_gamma"].reshape(1, H).astype(jnp.float32),
        "ln_beta": params["ln_beta"].reshape(1, H).astype(jnp.float32),
        "decoder_w": params["decoder_w"].astype(compute_dtype),      # (H, V)
        "bias": params["bias"].reshape(1, V).astype(jnp.float32),    # tied bias
    }


def mlm_head(hidden_states, prepared, *, eps=1e-12, tm=None, tv=None,
             compute_dtype=jnp.bfloat16, out_dtype=jnp.bfloat16):
    """hidden_states: [B, S, H] -> logits [B, S, V] (out_dtype, default bf16)."""
    B, S, H = hidden_states.shape
    V = prepared["decoder_w"].shape[1]
    M = B * S

    cbytes = jnp.dtype(compute_dtype).itemsize
    obytes = jnp.dtype(out_dtype).itemsize

    vmem_limit, tile_budget = _vmem_budgets()
    if tm is None:
        tm = 512
    if tv is None:
        tv = 8192 if tile_budget >= 64 * 1024 * 1024 else 4096

    # --- tile sizes, clamped to the problem size and the VMEM tile budget ----
    tm_eff = min(tm, _round_up(M, 16))           # multiple of 16 (bf16 sublanes)
    tv_eff = min(tv, _round_up(V, 128))          # multiple of 128 (lane dim)
    while (tv_eff > 128 and
           _decoder_tile_bytes(tm_eff, tv_eff, H, cbytes, obytes) > tile_budget):
        tv_eff = max(128, (tv_eff // 2 + 127) // 128 * 128)
    while (tm_eff > 16 and
           _decoder_tile_bytes(tm_eff, tv_eff, H, cbytes, obytes) > tile_budget):
        tm_eff = max(16, (tm_eff // 2 + 15) // 16 * 16)
    M_pad = _round_up(M, tm_eff)
    # TODO(synk): very large hidden sizes (H*H weight > VMEM budget) would need
    # K-tiling of the dense matmul; full-H blocks are used here.

    # --- rows: pad to the row tile (cheap: M*H, vs M*V logits) ---------------
    h2d = hidden_states.reshape(M, H)
    if M_pad != M:
        h2d = jnp.pad(h2d, ((0, M_pad - M), (0, 0)))

    # --- pass 1: transform ----------------------------------------------------
    t = pl.pallas_call(
        functools.partial(_transform_kernel, eps=eps, compute_dtype=compute_dtype),
        out_shape=jax.ShapeDtypeStruct((M_pad, H), compute_dtype),
        grid_spec=pltpu.PrefetchScalarGridSpec(
            num_scalar_prefetch=0,
            grid=(M_pad // tm_eff,),
            in_specs=[
                pl.BlockSpec((tm_eff, H), lambda i: (i, 0)),   # hidden rows
                pl.BlockSpec((H, H), lambda i: (0, 0)),        # dense weight
                pl.BlockSpec((1, H), lambda i: (0, 0)),        # dense bias
                pl.BlockSpec((1, H), lambda i: (0, 0)),        # LN gamma
                pl.BlockSpec((1, H), lambda i: (0, 0)),        # LN beta
            ],
            out_specs=pl.BlockSpec((tm_eff, H), lambda i: (i, 0)),
        ),
        compiler_params=pltpu.CompilerParams(
            dimension_semantics=("parallel",),
            vmem_limit_bytes=vmem_limit),
    )(h2d, prepared["dense_w"], prepared["dense_b"],
      prepared["ln_gamma"], prepared["ln_beta"])

    # --- pass 2: decoder (vocab tiles outer, row tiles inner) -----------------
    # No V padding: cdiv grid + masked edge blocks; output second dim is exactly V.
    out = pl.pallas_call(
        _decoder_kernel,
        out_shape=jax.ShapeDtypeStruct((M_pad, V), out_dtype),
        grid_spec=pltpu.PrefetchScalarGridSpec(
            num_scalar_prefetch=0,
            grid=(pl.cdiv(V, tv_eff), M_pad // tm_eff),
            in_specs=[
                pl.BlockSpec((tm_eff, H), lambda j, i: (i, 0)),     # activations
                pl.BlockSpec((H, tv_eff), lambda j, i: (0, j)),     # decoder weight
                pl.BlockSpec((1, tv_eff), lambda j, i: (0, j)),     # tied bias
            ],
            out_specs=pl.BlockSpec((tm_eff, tv_eff), lambda j, i: (i, j)),
        ),
        compiler_params=pltpu.CompilerParams(
            dimension_semantics=("parallel", "parallel"),
            vmem_limit_bytes=vmem_limit),
    )(t, prepared["decoder_w"], prepared["bias"])

    if M_pad != M:
        out = out[:M]
    return out.reshape(B, S, V)


def init_params(key, hidden_size, vocab_size):
    k1, k2 = jax.random.split(key, 2)
    scale = 0.02
    return {
        # stored as [in, out] so the kernel does x @ W directly
        "dense_w": scale * jax.random.normal(k1, (hidden_size, hidden_size), jnp.float32),
        "dense_b": jnp.zeros((hidden_size,), jnp.float32),
        "ln_gamma": jnp.ones((hidden_size,), jnp.float32),
        "ln_beta": jnp.zeros((hidden_size,), jnp.float32),
        "decoder_w": scale * jax.random.normal(k2, (hidden_size, vocab_size), jnp.float32),
        # tied bias parameter (torch.zeros(vocab_size) in __init__)
        "bias": jnp.zeros((vocab_size,), jnp.float32),
    }


if __name__ == "__main__":
    # small shapes; M=14 and V=300 exercise the row-pad and masked-vocab-edge paths.
    B, S, H, V = 2, 7, 128, 300
    key = jax.random.PRNGKey(0)
    kx, kp = jax.random.split(key)
    hidden_states = jax.random.normal(kx, (B, S, H), jnp.float32)
    params = init_params(kp, H, V)

    prepared = prepare_params(params)          # one-time weight cast (not per call)
    logits = mlm_head(hidden_states, prepared, eps=1e-12)
    jax.block_until_ready(logits)
    assert logits.shape == (B, S, V)

    # pure-JAX f32 reference (kernel uses bf16 matmul operands / bf16 logits,
    # f32 accumulation, so compare with a loose tolerance).
    x = hidden_states @ params["dense_w"] + params["dense_b"]
    x = 0.5 * x * (1.0 + lax.erf(x * 0.7071067811865476))
    mu = x.mean(-1, keepdims=True)
    var = ((x - mu) ** 2).mean(-1, keepdims=True)
    x = (x - mu) * lax.rsqrt(var + 1e-12) * params["ln_gamma"] + params["ln_beta"]
    ref = x @ params["decoder_w"] + params["bias"]
    assert jnp.allclose(logits.astype(jnp.float32), ref, atol=2e-2, rtol=2e-2)

    print("KERNEL_OK")
</pallas_src>

<mosaic_0001>
module attributes {stable_mosaic.version = 11 : i64} {
  func.func @_transform_kernel(%arg0: i32, %arg1: memref<16x128xf32, #tpu.memory_space<vmem>>, %arg2: memref<128x128xbf16, #tpu.memory_space<vmem>>, %arg3: memref<1x128xf32, #tpu.memory_space<vmem>>, %arg4: memref<1x128xf32, #tpu.memory_space<vmem>>, %arg5: memref<1x128xf32, #tpu.memory_space<vmem>>, %arg6: memref<16x128xbf16, #tpu.memory_space<vmem>>) attributes {dimension_semantics = [#tpu.dimension_semantics<parallel>], iteration_bounds = array<i64: 1>, scalar_prefetch = 0 : i64, scratch_operands = 0 : i64, tpu.core_type = #tpu.core_type<tc>, window_params = [{transform_indices = @transform_0, window_bounds = array<i64: 16, 128>}, {pipeline_mode = #tpu.pipeline_mode<synchronous>, transform_indices = @transform_1, window_bounds = array<i64: 128, 128>}, {pipeline_mode = #tpu.pipeline_mode<synchronous>, transform_indices = @transform_2, window_bounds = array<i64: 1, 128>}, {pipeline_mode = #tpu.pipeline_mode<synchronous>, transform_indices = @transform_3, window_bounds = array<i64: 1, 128>}, {pipeline_mode = #tpu.pipeline_mode<synchronous>, transform_indices = @transform_4, window_bounds = array<i64: 1, 128>}, {transform_indices = @transform_5, window_bounds = array<i64: 16, 128>}]} {
    %c0 = arith.constant 0 : index
    %c0_0 = arith.constant 0 : index
    %0 = vector.load %arg1[%c0, %c0_0] : memref<16x128xf32, #tpu.memory_space<vmem>>, vector<16x128xf32>
    %1 = arith.truncf %0 : vector<16x128xf32> to vector<16x128xbf16>
    %c0_1 = arith.constant 0 : index
    %c0_2 = arith.constant 0 : index
    %2 = vector.load %arg2[%c0_1, %c0_2] : memref<128x128xbf16, #tpu.memory_space<vmem>>, vector<128x128xbf16>
    %cst = arith.constant dense<0.000000e+00> : vector<16x128xf32>
    %3 = tpu.matmul %1, %2, %cst {dimension_numbers = #tpu.dot_dimension_numbers<[1], [0], [0], [1], [0, 0, 1, 1], [], []>} : vector<16x128xbf16>, vector<128x128xbf16>, vector<16x128xf32> -> vector<16x128xf32>
    %c0_3 = arith.constant 0 : index
    %c0_4 = arith.constant 0 : index
    %4 = vector.load %arg3[%c0_3, %c0_4] : memref<1x128xf32, #tpu.memory_space<vmem>>, vector<1x128xf32>
    %5 = vector.broadcast %4 : vector<1x128xf32> to vector<16x128xf32>
    %6 = arith.addf %3, %5 : vector<16x128xf32>
    %cst_5 = arith.constant 5.000000e-01 : f32
    %7 = vector.broadcast %cst_5 : f32 to vector<16x128xf32>
    %8 = arith.mulf %7, %6 : vector<16x128xf32>
    %cst_6 = arith.constant 0.707106769 : f32
    %9 = vector.broadcast %cst_6 : f32 to vector<16x128xf32>
    %10 = arith.mulf %6, %9 : vector<16x128xf32>
    %11 = math.erf %10 : vector<16x128xf32>
    %cst_7 = arith.constant 1.000000e+00 : f32
    %12 = vector.broadcast %cst_7 : f32 to vector<16x128xf32>
    %13 = arith.addf %12, %11 : vector<16x128xf32>
    %14 = arith.mulf %8, %13 : vector<16x128xf32>
    %cst_8 = arith.constant dense<0.000000e+00> : vector<16xf32>
    %15 = vector.multi_reduction <add>, %14, %cst_8 [1] : vector<16x128xf32> to vector<16xf32>
    %16 = vector.shape_cast %15 : vector<16xf32> to vector<16x1xf32>
    %cst_9 = arith.constant 1.280000e+02 : f32
    %17 = vector.broadcast %cst_9 : f32 to vector<16x1xf32>
    %18 = arith.divf %16, %17 : vector<16x1xf32>
    %19 = arith.mulf %14, %14 : vector<16x128xf32>
    %cst_10 = arith.constant dense<0.000000e+00> : vector<16xf32>
    %20 = vector.multi_reduction <add>, %19, %cst_10 [1] : vector<16x128xf32> to vector<16xf32>
    %21 = vector.shape_cast %20 : vector<16xf32> to vector<16x1xf32>
    %cst_11 = arith.constant 1.280000e+02 : f32
    %22 = vector.broadcast %cst_11 : f32 to vector<16x1xf32>
    %23 = arith.divf %21, %22 : vector<16x1xf32>
    %24 = arith.mulf %18, %18 : vector<16x1xf32>
    %25 = arith.subf %23, %24 : vector<16x1xf32>
    %cst_12 = arith.constant 0.000000e+00 : f32
    %26 = vector.broadcast %cst_12 : f32 to vector<16x1xf32>
    %27 = arith.maximumf %25, %26 : vector<16x1xf32>
    %28 = vector.broadcast %18 : vector<16x1xf32> to vector<16x128xf32>
    %29 = arith.subf %14, %28 : vector<16x128xf32>
    %cst_13 = arith.constant 9.99999996E-13 : f32
    %30 = vector.broadcast %cst_13 : f32 to vector<16x1xf32>
    %31 = arith.addf %27, %30 : vector<16x1xf32>
    %32 = math.rsqrt %31 : vector<16x1xf32>
    %33 = vector.broadcast %32 : vector<16x1xf32> to vector<16x128xf32>
    %34 = arith.mulf %29, %33 : vector<16x128xf32>
    %c0_14 = arith.constant 0 : index
    %c0_15 = arith.constant 0 : index
    %35 = vector.load %arg4[%c0_14, %c0_15] : memref<1x128xf32, #tpu.memory_space<vmem>>, vector<1x128xf32>
    %36 = vector.broadcast %35 : vector<1x128xf32> to vector<16x128xf32>
    %37 = arith.mulf %34, %36 : vector<16x128xf32>
    %c0_16 = arith.constant 0 : index
    %c0_17 = arith.constant 0 : index
    %38 = vector.load %arg5[%c0_16, %c0_17] : memref<1x128xf32, #tpu.memory_space<vmem>>, vector<1x128xf32>
    %39 = vector.broadcast %38 : vector<1x128xf32> to vector<16x128xf32>
    %40 = arith.addf %37, %39 : vector<16x128xf32>
    %41 = arith.truncf %40 : vector<16x128xf32> to vector<16x128xbf16>
    %c0_18 = arith.constant 0 : index
    %c0_19 = arith.constant 0 : index
    %42 = vector.load %arg6[%c0_18, %c0_19] : memref<16x128xbf16, #tpu.memory_space<vmem>>, vector<16x128xbf16>
    tpu.vector_store %arg6[%c0_18, %c0_19], %41 {strides = array<i32>} : memref<16x128xbf16, #tpu.memory_space<vmem>>, vector<16x128xbf16>,
    return
  }
  func.func @transform_0(%arg0: i32) -> (i32, i32) {
    %c0_i32 = arith.constant 0 : i32
    %c0_i32_0 = arith.constant 0 : i32
    return %arg0, %c0_i32 : i32, i32
  }
  func.func @transform_1(%arg0: i32) -> (i32, i32) {
    %c0_i32 = arith.constant 0 : i32
    %c0_i32_0 = arith.constant 0 : i32
    %c0_i32_1 = arith.constant 0 : i32
    return %c0_i32, %c0_i32_0 : i32, i32
  }
  func.func @transform_2(%arg0: i32) -> (i32, i32) {
    %c0_i32 = arith.constant 0 : i32
    %c0_i32_0 = arith.constant 0 : i32
    %c0_i32_1 = arith.constant 0 : i32
    return %c0_i32, %c0_i32_0 : i32, i32
  }
  func.func @transform_3(%arg0: i32) -> (i32, i32) {
    %c0_i32 = arith.constant 0 : i32
    %c0_i32_0 = arith.constant 0 : i32
    %c0_i32_1 = arith.constant 0 : i32
    return %c0_i32, %c0_i32_0 : i32, i32
  }
  func.func @transform_4(%arg0: i32) -> (i32, i32) {
    %c0_i32 = arith.constant 0 : i32
    %c0_i32_0 = arith.constant 0 : i32
    %c0_i32_1 = arith.constant 0 : i32
    return %c0_i32, %c0_i32_0 : i32, i32
  }
  func.func @transform_5(%arg0: i32) -> (i32, i32) {
    %c0_i32 = arith.constant 0 : i32
    %c0_i32_0 = arith.constant 0 : i32
    return %arg0, %c0_i32 : i32, i32
  }
}

</mosaic_0001>

<llo_original>
// kernel: tpu_custom_call.1
$region0: #{tpu_custom_call.1}
  #allocation0 [shape = 'u32[]', space=smem, size = 0x4, offset = 0x4, fixed_abs, tag = 'smem constant byte address 0x4 - core index']
  #allocation1 [shape = 'u32[144,128]{1,0:T(1,128)}', space=vmem, size = 0x12000, scoped, tag = 'internal scratch']
  %s0 = inlined_call_operand.hbm [shape: f32[16,128], index: 0, kind: input, shape index: {}]
  %s1 = inlined_call_operand.hbm [shape: bf16[128,128], index: 1, kind: input, shape index: {}]
  %s2 = inlined_call_operand.vmem [shape: f32[1,128], index: 2, kind: input, shape index: {}]
  %s3 = inlined_call_operand.vmem [shape: f32[1,128], index: 3, kind: input, shape index: {}]
  %s4 = inlined_call_operand.vmem [shape: f32[1,128], index: 4, kind: input, shape index: {}]
  %s5 = inlined_call_operand.hbm [shape: bf16[16,128], index: 5, kind: output, shape index: {}]
  %s6 = sld [smem:[#allocation0]]
  $region38: #{tpu_custom_call.1} parent=0
    _
  %s8 = ssub.s32 1, %s6
  %s9 = scalar_select 0, %s8, %s6
  $region1: #{tpu_custom_call.1} parent=0
    #allocation2 [shape = 'u8[8192]{0}', space=vmem, size = 0x2000, scoped, tag = 'input window, operand 0, single buffered']
    #allocation3 [shape = 's32[1]{0}', space=sflag, size = 0x4, scoped, tag = 'scoped memory for tpu_custom_call.1']
    #allocation4 [shape = 's32[1]{0}', space=sflag, size = 0x4, scoped, tag = 'scoped memory for tpu_custom_call.1']
    #allocation5 [shape = 'u8[32768]{0}', space=vmem, size = 0x8000, scoped, tag = 'input window, operand 1, single buffered']
    #allocation6 [shape = 's32[1]{0}', space=sflag, size = 0x4, scoped, tag = 'scoped memory for tpu_custom_call.1']
    #allocation7 [shape = 'u8[4096]{0}', space=vmem, size = 0x1000, scoped, tag = 'output window, operand 0, single buffered']
    %10 = vsyncpa [#allocation3], 0
    %11 = vsyncpa [#allocation6], 0
    %12 = vsyncpa [#allocation4], 0
    // Predicated region
    $region2: #{tpu_custom_call.1} parent=1 // pred_check
      _
    $region3: #{tpu_custom_call.1} parent=1 // pred_check_branch
      %14 = sbr.rel (0) target = $region5
    $region4: #{tpu_custom_call.1} parent=1 // pred_region
      %s16 = ssub.s32 256, 256
      %17 = vsyncadd [#allocation3], %s16
      %s18 = sshll.u32 [#allocation2], 4
      %s19 = int_to_ptr.vmem [resolvable:$true] %s18
      %24 = dma.hbm_to_vmem [thread:$0]  %s0, 256, %s19, [#allocation3], 128, 128, 8
    $region5: #{tpu_custom_call.1} parent=1 // pred_fallthru
      _
    // Predicated region
    $region6: #{tpu_custom_call.1} parent=1 // pred_check
      _
    $region7: #{tpu_custom_call.1} parent=1 // pred_check_branch
      %26 = sbr.rel (0) target = $region9
    $region8: #{tpu_custom_call.1} parent=1 // pred_region
      %s28 = ssub.s32 1024, 1024
      %29 = vsyncadd [#allocation6], %s28
      %s30 = sshll.u32 [#allocation5], 4
      %s31 = int_to_ptr.vmem [resolvable:$true] %s30
      %36 = dma.hbm_to_vmem [thread:$0]  %s1, 1024, %s31, [#allocation6], 64, 64, 4
    $region9: #{tpu_custom_call.1} parent=1 // pred_fallthru
      _
    // Predicated region
    $region10: #{tpu_custom_call.1} parent=1 // pred_check
      _
    $region11: #{tpu_custom_call.1} parent=1 // pred_check_branch
      %38 = sbr.rel (0) target = $region13
    $region12: #{tpu_custom_call.1} parent=1 // pred_region
      _
    $region13: #{tpu_custom_call.1} parent=1 // pred_fallthru
      _
    // Predicated region
    $region14: #{tpu_custom_call.1} parent=1 // pred_check
      _
    $region15: #{tpu_custom_call.1} parent=1 // pred_check_branch
      %40 = sbr.rel (0) target = $region17
    $region16: #{tpu_custom_call.1} parent=1 // pred_region
      _
    $region17: #{tpu_custom_call.1} parent=1 // pred_fallthru
      _
    // Predicated region
    $region18: #{tpu_custom_call.1} parent=1 // pred_check
      _
    $region19: #{tpu_custom_call.1} parent=1 // pred_check_branch
      %42 = sbr.rel (0) target = $region21
    $region20: #{tpu_custom_call.1} parent=1 // pred_region
      _
    $region21: #{tpu_custom_call.1} parent=1 // pred_fallthru
      _
    // Predicated region
    $region22: #{tpu_custom_call.1} parent=1 // pred_check
      _
    $region23: #{tpu_custom_call.1} parent=1 // pred_check_branch
      %44 = sbr.rel (0) target = $region25
    $region24: #{tpu_custom_call.1} parent=1 // pred_region
      %45 = dma.done [#allocation3], 256
    $region25: #{tpu_custom_call.1} parent=1 // pred_fallthru
      _
    // Predicated region
    $region26: #{tpu_custom_call.1} parent=1 // pred_check
      _
    $region27: #{tpu_custom_call.1} parent=1 // pred_check_branch
      %47 = sbr.rel (0) target = $region29
    $region28: #{tpu_custom_call.1} parent=1 // pred_region
      %48 = dma.done [#allocation6], 1024
    $region29: #{tpu_custom_call.1} parent=1 // pred_fallthru
      _
    %v50 = vld [vmem:[#allocation2] sm:$0xff]
    %v51 = vld [vmem:[#allocation2 + $0x8] sm:$0xff]
    %v52 = vpack.c.bf16 %v51, %v50
    %v53 = vld [vmem:[#allocation5] sm:$0xf]
    %v54 = vld [vmem:[#allocation5 + $0x4] sm:$0xf]
    %v55 = vld [vmem:[#allocation5 + $0x8] sm:$0xf]
    %v56 = vld [vmem:[#allocation5 + $0xc] sm:$0xf]
    %v57 = vld [vmem:[#allocation5 + $0x10] sm:$0xf]
    %v58 = vld [vmem:[#allocation5 + $0x14] sm:$0xf]
    %v59 = vld [vmem:[#allocation5 + $0x18] sm:$0xf]
    %v60 = vld [vmem:[#allocation5 + $0x1c] sm:$0xf]
    %v61 = vld [vmem:[#allocation5 + $0x20] sm:$0xf]
    %v62 = vld [vmem:[#allocation5 + $0x24] sm:$0xf]
    %v63 = vld [vmem:[#allocation5 + $0x28] sm:$0xf]
    %v64 = vld [vmem:[#allocation5 + $0x2c] sm:$0xf]
    %v65 = vld [vmem:[#allocation5 + $0x30] sm:$0xf]
    %v66 = vld [vmem:[#allocation5 + $0x34] sm:$0xf]
    %v67 = vld [vmem:[#allocation5 + $0x38] sm:$0xf]
    %v68 = vld [vmem:[#allocation5 + $0x3c] sm:$0xf]
    %v69 = vld [vmem:[%s2] sm:$0x1]
    %v71 = vlaneseq
    %v72 = vshrl.u32 %v71, 7
    %v73 = vsub.s32 0, %v72
    %v74 = vrot.slane %v69, %v73
    %v92 = vunpack.c.l.b16 %v53
    %v93 = vunpack.c.l.b16 %v54
    %v94 = vunpack.c.l.b16 %v55
    %v95 = vunpack.c.l.b16 %v56
    %v96 = vunpack.c.l.b16 %v57
    %v97 = vunpack.c.l.b16 %v58
    %v98 = vunpack.c.l.b16 %v59
    %v99 = vunpack.c.l.b16 %v60
    %v100 = vunpack.c.l.b16 %v61
    %v101 = vunpack.c.l.b16 %v62
    %v102 = vunpack.c.l.b16 %v63
    %v103 = vunpack.c.l.b16 %v64
    %v104 = vunpack.c.l.b16 %v65
    %v105 = vunpack.c.l.b16 %v66
    %v106 = vunpack.c.l.b16 %v67
    %v107 = vunpack.c.l.b16 %v68
    %v108 = vpack.c.b16 %v93, %v92
    %v109 = vpack.c.b16 %v95, %v94
    %v110 = vpack.c.b16 %v97, %v96
    %v111 = vpack.c.b16 %v99, %v98
    %v112 = vpack.c.b16 %v101, %v100
    %v113 = vpack.c.b16 %v103, %v102
    %v114 = vpack.c.b16 %v105, %v104
    %v115 = vpack.c.b16 %v107, %v106
    %124 = vmatprep.subr.bf16.mxu0 0
    %125 = vmatpush1.bf16.msra.mxu0 %v115
    %126 = vmatprep.subr.bf16.mxu0 0
    %127 = vmatpush1.bf16.msra.mxu0 %v114
    %128 = vmatprep.subr.bf16.mxu0 0
    %129 = vmatpush1.bf16.msra.mxu0 %v113
    %130 = vmatprep.subr.bf16.mxu0 0
    %131 = vmatpush1.bf16.msra.mxu0 %v112
    %132 = vmatprep.subr.bf16.mxu0 0
    %133 = vmatpush1.bf16.msra.mxu0 %v111
    %134 = vmatprep.subr.bf16.mxu0 0
    %135 = vmatpush1.bf16.msra.mxu0 %v110
    %136 = vmatprep.subr.bf16.mxu0 0
    %137 = vmatpush1.bf16.msra.mxu0 %v109
    %138 = vmatprep.subr.bf16.mxu0 0
    %139 = vmatpush1.bf16.msra.mxu0 %v108
    %140 = vmatprep.subr.bf16.mxu0 0
    %141 = vmatpush2.bf16.msra.mxu0 0
    %142 = vmatprep.subr.bf16.mxu0 0
    %143 = vmatpush2.bf16.msra.mxu0 0
    %144 = vmatprep.subr.bf16.mxu0 0
    %145 = vmatpush2.bf16.msra.mxu0 0
    %146 = vmatprep.subr.bf16.mxu0 0
    %147 = vmatpush2.bf16.msra.mxu0 0
    %148 = vmatprep.subr.bf16.mxu0 0
    %149 = vmatpush2.bf16.msra.mxu0 0
    %150 = vmatprep.subr.bf16.mxu0 0
    %151 = vmatpush2.bf16.msra.mxu0 0
    %152 = vmatprep.subr.bf16.mxu0 0
    %153 = vmatpush2.bf16.msra.mxu0 0
    %154 = vmatprep.subr.bf16.mxu0 0
    %155 = vmatpush2.bf16.msra.mxu0 0
    %156 = vmatprep.mubr.bf16.mxu0 0
    %157 = vmatmul.mubr.bf16.gmra.mxu0 %v52
    %v158 = vpop.f32.mrf.mxu0
    %v159 = vadd.f32 %v74, %v158
    %v160 = vpop.f32.mrf.mxu0
    %v161 = vpop.f32.mrf.mxu0
    %v162 = vadd.f32 %v74, %v161
    %v163 = vpop.f32.mrf.mxu0
    %164 = vdwg.mxu0
    %v165 = vmul.f32 %v159, 0.5
    %v166 = vmul.f32 %v162, 0.5
    %v167 = vmul.f32 %v159, 0.70710677
    %v168 = vmul.f32 %v162, 0.70710677
    %v169 = verf.f32.pop %v167
    %v170 = verf.f32.pop %v168
    %v171 = vadd.f32 %v169, 1.0
    %v172 = vadd.f32 %v170, 1.0
    %v173 = vmul.f32 %v165, %v171
    %v174 = vmul.f32 %v166, %v172
    %175 = vadd.xlane.f32.xlu0 %v173
    %v176 = vpop.xlane.xlu0 %175
    %177 = vadd.xlane.f32.xlu0 %v174
    %v178 = vpop.xlane.xlu0 %177
    %v179 = vrcp.pop 128.0
    %v180 = vmul.f32 %v176, %v179
    %v181 = vmul.f32 %v178, %v179
    %v182 = vmul.f32 %v173, %v173
    %v183 = vmul.f32 %v174, %v174
    %184 = vadd.xlane.f32.xlu0 %v182
    %v185 = vpop.xlane.xlu0 %184
    %186 = vadd.xlane.f32.xlu0 %v183
    %v187 = vpop.xlane.xlu0 %186
    %v188 = vmul.f32 %v185, %v179
    %v189 = vmul.f32 %v187, %v179
    %v190 = vmul.f32 %v180, %v180
    %v191 = vmul.f32 %v181, %v181
    %v192 = vsub.f32 %v188, %v190
    %v193 = vsub.f32 %v189, %v191
    %v194 = vmax.f32 %v192, 0.0
    %v195 = vmax.f32 %v193, 0.0
    %v196 = vsub.f32 %v173, %v180
    %v197 = vsub.f32 %v174, %v181
    %v198 = vadd.f32 %v194, 1e-12
    %v199 = vadd.f32 %v195, 1e-12
    %v200 = vrsqrt.pop %v198
    %v201 = vrsqrt.pop %v199
    %v202 = vmul.f32 %v196, %v200
    %v203 = vmul.f32 %v197, %v201
    %v204 = vld [vmem:[%s3] sm:$0x1]
    %v206 = vlaneseq
    %v207 = vshrl.u32 %v206, 7
    %v208 = vsub.s32 0, %v207
    %v209 = vrot.slane %v204, %v208
    %v211 = vmul.f32 %v202, %v209
    %v212 = vmul.f32 %v203, %v209
    %v213 = vld [vmem:[%s4] sm:$0x1]
    %v215 = vlaneseq
    %v216 = vshrl.u32 %v215, 7
    %v217 = vsub.s32 0, %v216
    %v218 = vrot.slane %v213, %v217
    %v220 = vadd.f32 %v211, %v218
    %v221 = vadd.f32 %v212, %v218
    %v222 = vpack.c.bf16 %v221, %v220
    %v224 = vunpack.c.l.b16 %v222
    %v225 = vunpack.c.h.b16 %v222
    %v226 = vpack.c.b16 %v224, %v224
    %v227 = vpack.c.b16 %v225, %v225
    %230 = vst [vmem:[#allocation7] sm:$0xf] %v226
    %231 = vst [vmem:[#allocation7 + $0x4] sm:$0xf] %v227
    // Predicated region
    $region30: #{tpu_custom_call.1} parent=1 // pred_check
      _
    $region31: #{tpu_custom_call.1} parent=1 // pred_check_branch
      %233 = sbr.rel (0) target = $region33
    $region32: #{tpu_custom_call.1} parent=1 // pred_region
      %s235 = ssub.s32 128, 128
      %236 = vsyncadd [#allocation4], %s235
      %s237 = sshll.u32 [#allocation7], 4
      %s238 = int_to_ptr.vmem [resolvable:$true] %s237
      %243 = dma.vmem_to_hbm [thread:$0]  %s238, 128, %s5, [#allocation4], 64, 64, 4
    $region33: #{tpu_custom_call.1} parent=1 // pred_fallthru
      _
    // Predicated region
    $region34: #{tpu_custom_call.1} parent=1 // pred_check
      _
    $region35: #{tpu_custom_call.1} parent=1 // pred_check_branch
      %245 = sbr.rel (0) target = $region37
    $region36: #{tpu_custom_call.1} parent=1 // pred_region
      %246 = dma.done [#allocation4], 128
    $region37: #{tpu_custom_call.1} parent=1 // pred_fallthru
      _
    %247 = vsyncpa [#allocation3], 1
    %248 = vsyncpa [#allocation6], 1
    %249 = vsyncpa [#allocation4], 1

</llo_original>
